<compile_context>
chip_gen: v7x
topology: tpu7x:2x2x1
jax: 0.10.0
libtpu: 0.0.40
codegen_flags: <defaults>
</compile_context>

<pallas_src>
import functools

import jax
import jax.numpy as jnp
from jax.experimental import pallas as pl
from jax.experimental.pallas import tpu as pltpu


def _get_loss_kernel(pred_ref, target_ref, params_ref, out_ref, *, l2_lambda):
    # Cast after load: keeps HBM->VMEM traffic at the native dtype width.
    pred = pred_ref[...].astype(jnp.float32)      # [B, C]
    target = target_ref[...].astype(jnp.float32)  # [B, C]

    # Single packed parameter tile: one load, slice the value (no extra DMAs).
    params = params_ref[...]                      # [B, 1+D] f32
    clsw_col = params[:, 0:1]                     # [B, 1] per-row class weights (B == C quirk)
    attn_w = params[0:1, 1:]                      # [1, D] attention Linear weight (lane-dense)

    # ---- weighted cross entropy, fused into one reduction ----
    # log_softmax (max-shifted)
    m = jnp.max(pred, axis=-1, keepdims=True)
    shifted = pred - m
    lse = jnp.log(jnp.sum(jnp.exp(shifted), axis=-1, keepdims=True))
    log_sm = shifted - lse                        # [B, C]

    b = pred.shape[0]
    # mean_b( weights[b] * (-sum_c log_sm[b,c]*target[b,c]) )  as one 2D reduction
    wce = -jnp.sum(log_sm * target * clsw_col) * (1.0 / b)

    # ---- L2 over non-bias parameters (only the attention Linear weight) ----
    l2 = jnp.sum(attn_w * attn_w)

    # TODO(synk): the original forward also computes attn_pred = pred * sigmoid(Linear(trans_feat));
    # it never affects the returned loss, so it is intentionally not emitted.
    out_ref[0] = wce + l2_lambda * l2


def get_loss_pallas(pred, target, trans_feat, cls_weights, attn_w, attn_b,
                    l2_lambda=0.01):
    B, C = pred.shape
    # PyTorch broadcast of [B] * [C] class-weight vector requires B == C.
    assert B == C, "original module only broadcasts when batch == num_classes"
    D = int(attn_w.reshape(-1).shape[0])
    # trans_feat / attn_b only feed the dead attention branch -> not kernel operands.
    del trans_feat, attn_b

    # Pack the tiny parameters into a single [B, 1+D] f32 operand.
    params = jnp.zeros((B, 1 + D), jnp.float32)
    params = params.at[:, 0].set(cls_weights.astype(jnp.float32).reshape(B))
    params = params.at[0, 1:].set(attn_w.astype(jnp.float32).reshape(D))

    kernel = functools.partial(_get_loss_kernel, l2_lambda=float(l2_lambda))
    out = pl.pallas_call(
        kernel,
        out_shape=jax.ShapeDtypeStruct((1,), jnp.float32),
        in_specs=[
            pl.BlockSpec(memory_space=pltpu.VMEM),   # pred   [B, C]
            pl.BlockSpec(memory_space=pltpu.VMEM),   # target [B, C]
            pl.BlockSpec(memory_space=pltpu.VMEM),   # packed params [B, 1+D]
        ],
        out_specs=pl.BlockSpec(memory_space=pltpu.SMEM),  # scalar loss, 1-D (1,)
        compiler_params=pltpu.CompilerParams(vmem_limit_bytes=4 * 1024 * 1024),
        cost_estimate=pl.CostEstimate(
            flops=8 * B * C + 2 * D,
            transcendentals=B * C + B,
            bytes_accessed=(2 * B * C + B * (1 + D) + 1) * 4,
        ),
    )(pred, target, params)
    return out[0]


def _reference(pred, target, trans_feat, cls_weights, attn_w, attn_b, l2_lambda=0.01):
    log_sm = jax.nn.log_softmax(pred.astype(jnp.float32), axis=-1)
    ce = -jnp.sum(log_sm * target.astype(jnp.float32), axis=-1)   # [B]
    wce = jnp.mean(ce * cls_weights)                              # relies on B == C
    l2 = jnp.sum(jnp.square(attn_w))                              # bias excluded
    return wce + l2_lambda * l2


if __name__ == "__main__":
    # Small shapes consistent with the forward: batch == num_classes (see note above).
    B = 8           # batch size
    C = 8           # num_classes (== B, required by the module's broadcast)
    D = 32          # trans_feat feature dim (attention Linear input dim)
    L2_LAMBDA = 0.01

    key = jax.random.PRNGKey(0)
    k1, k2, k3, k4 = jax.random.split(key, 4)

    pred = jax.random.normal(k1, (B, C), dtype=jnp.float32)
    labels = jax.random.randint(k2, (B,), 0, C)
    target = jax.nn.one_hot(labels, C, dtype=jnp.float32)    # soft/one-hot targets
    trans_feat = jax.random.normal(k3, (B, D), dtype=jnp.float32)

    # Deterministic parameter init (attention = Linear(D, 1) + Sigmoid).
    attn_w = 0.1 * jax.random.normal(k4, (D, 1), dtype=jnp.float32)
    attn_b = jnp.zeros((1,), dtype=jnp.float32)

    # self.weights = ones(num_classes); weights[0] *= 0.5
    cls_weights = jnp.ones((C,), dtype=jnp.float32).at[0].multiply(0.5)

    loss = get_loss_pallas(pred, target, trans_feat, cls_weights, attn_w, attn_b,
                           l2_lambda=L2_LAMBDA)
    jax.block_until_ready(loss)

    ref = _reference(pred, target, trans_feat, cls_weights, attn_w, attn_b,
                     l2_lambda=L2_LAMBDA)
    if not jnp.allclose(loss, ref, rtol=1e-5, atol=1e-5):
        raise AssertionError(f"mismatch: pallas={loss} ref={ref}")

    print("KERNEL_OK")
</pallas_src>

<mosaic_0001>
module attributes {stable_mosaic.version = 11 : i64} {
  func.func @_get_loss_kernel(%arg0: memref<8x8xf32, #tpu.memory_space<vmem>>, %arg1: memref<8x8xf32, #tpu.memory_space<vmem>>, %arg2: memref<8x33xf32, #tpu.memory_space<vmem>>, %arg3: memref<1xf32, #tpu.memory_space<smem>>) attributes {dimension_semantics = [], scalar_prefetch = 0 : i64, scratch_operands = 0 : i64, tpu.core_type = #tpu.core_type<tc>} {
    %c0 = arith.constant 0 : index
    %c0_0 = arith.constant 0 : index
    %0 = vector.load %arg0[%c0, %c0_0] : memref<8x8xf32, #tpu.memory_space<vmem>>, vector<8x8xf32>
    %c0_1 = arith.constant 0 : index
    %c0_2 = arith.constant 0 : index
    %1 = vector.load %arg1[%c0_1, %c0_2] : memref<8x8xf32, #tpu.memory_space<vmem>>, vector<8x8xf32>
    %c0_3 = arith.constant 0 : index
    %c0_4 = arith.constant 0 : index
    %2 = vector.load %arg2[%c0_3, %c0_4] : memref<8x33xf32, #tpu.memory_space<vmem>>, vector<8x33xf32>
    %3 = vector.extract_strided_slice %2 {offsets = [0, 0], sizes = [8, 1], strides = [1, 1]} : vector<8x33xf32> to vector<8x1xf32>
    %4 = vector.extract_strided_slice %2 {offsets = [0, 1], sizes = [1, 32], strides = [1, 1]} : vector<8x33xf32> to vector<1x32xf32>
    %cst = arith.constant dense<0xFF800000> : vector<8xf32>
    %5 = vector.multi_reduction <maximumf>, %0, %cst [1] : vector<8x8xf32> to vector<8xf32>
    %6 = vector.shape_cast %5 : vector<8xf32> to vector<8x1xf32>
    %7 = vector.broadcast %6 : vector<8x1xf32> to vector<8x8xf32>
    %8 = arith.subf %0, %7 : vector<8x8xf32>
    %9 = math.exp %8 : vector<8x8xf32>
    %cst_5 = arith.constant dense<0.000000e+00> : vector<8xf32>
    %10 = vector.multi_reduction <add>, %9, %cst_5 [1] : vector<8x8xf32> to vector<8xf32>
    %11 = vector.shape_cast %10 : vector<8xf32> to vector<8x1xf32>
    %12 = math.log %11 : vector<8x1xf32>
    %13 = vector.broadcast %12 : vector<8x1xf32> to vector<8x8xf32>
    %14 = arith.subf %8, %13 : vector<8x8xf32>
    %15 = arith.mulf %14, %1 : vector<8x8xf32>
    %16 = vector.broadcast %3 : vector<8x1xf32> to vector<8x8xf32>
    %17 = arith.mulf %15, %16 : vector<8x8xf32>
    %18 = vector.shape_cast %17 : vector<8x8xf32> to vector<1x8x8xf32>
    %cst_6 = arith.constant dense<0.000000e+00> : vector<1xf32>
    %19 = vector.multi_reduction <add>, %18, %cst_6 [1, 2] : vector<1x8x8xf32> to vector<1xf32>
    %20 = vector.shape_cast %19 : vector<1xf32> to vector<1x1x1xf32>
    %21 = vector.extract %20[0, 0, 0] : f32 from vector<1x1x1xf32>
    %cst_7 = arith.constant 0.000000e+00 : f32
    %22 = arith.subf %cst_7, %21 : f32
    %cst_8 = arith.constant 1.250000e-01 : f32
    %23 = arith.mulf %22, %cst_8 : f32
    %24 = arith.mulf %4, %4 : vector<1x32xf32>
    %25 = vector.shape_cast %24 : vector<1x32xf32> to vector<1x1x32xf32>
    %cst_9 = arith.constant dense<0.000000e+00> : vector<1xf32>
    %26 = vector.multi_reduction <add>, %25, %cst_9 [1, 2] : vector<1x1x32xf32> to vector<1xf32>
    %27 = vector.shape_cast %26 : vector<1xf32> to vector<1x1x1xf32>
    %28 = vector.extract %27[0, 0, 0] : f32 from vector<1x1x1xf32>
    %cst_10 = arith.constant 0.00999999977 : f32
    %29 = arith.mulf %cst_10, %28 : f32
    %30 = arith.addf %23, %29 : f32
    %c0_11 = arith.constant 0 : index
    %31 = memref.load %arg3[%c0_11] : memref<1xf32, #tpu.memory_space<smem>>
    memref.store %30, %arg3[%c0_11] : memref<1xf32, #tpu.memory_space<smem>>
    return
  }
}

</mosaic_0001>

<llo_original>
// kernel: tpu_custom_call.1
$region0: #{tpu_custom_call.1}
  #allocation0 [shape = 'u32[]', space=smem, size = 0x4, offset = 0x4, fixed_abs, tag = 'smem constant byte address 0x4 - core index']
  #allocation1 [shape = 'u32[144,128]{1,0:T(1,128)}', space=vmem, size = 0x12000, scoped, tag = 'internal scratch']
  %s0 = inlined_call_operand.hbm [shape: f32[8,8], index: 0, kind: input, shape index: {}]
  %s1 = inlined_call_operand.hbm [shape: f32[8,8], index: 1, kind: input, shape index: {}]
  %s2 = inlined_call_operand.hbm [shape: f32[8,33], index: 2, kind: input, shape index: {}]
  %s3 = inlined_call_operand.hbm [shape: f32[1], index: 3, kind: output, shape index: {}]
  %s4 = sld [smem:[#allocation0]]
  $region34: #{tpu_custom_call.1} parent=0
    _
  %s6 = ssub.s32 1, %s4
  %s7 = scalar_select 0, %s6, %s4
  $region1: #{tpu_custom_call.1} parent=0
    #allocation2 [shape = 'u8[4096]{0}', space=vmem, size = 0x1000, scoped, tag = 'input window, operand 0, single buffered']
    #allocation3 [shape = 's32[1]{0}', space=sflag, size = 0x4, scoped, tag = 'scoped memory for tpu_custom_call.1']
    #allocation4 [shape = 's32[1]{0}', space=sflag, size = 0x4, scoped, tag = 'scoped memory for tpu_custom_call.1']
    #allocation5 [shape = 'u8[4096]{0}', space=vmem, size = 0x1000, scoped, tag = 'input window, operand 1, single buffered']
    #allocation6 [shape = 's32[1]{0}', space=sflag, size = 0x4, scoped, tag = 'scoped memory for tpu_custom_call.1']
    #allocation7 [shape = 'u8[4096]{0}', space=vmem, size = 0x1000, scoped, tag = 'input window, operand 2, single buffered']
    #allocation8 [shape = 'u8[512]{0}', space=smem, size = 0x200, scoped, tag = 'output window, operand 0, single buffered']
    %8 = vsyncpa [#allocation3], 0
    %9 = vsyncpa [#allocation6], 0
    %10 = vsyncpa [#allocation4], 0
    // Predicated region
    $region2: #{tpu_custom_call.1} parent=1 // pred_check
      _
    $region3: #{tpu_custom_call.1} parent=1 // pred_check_branch
      %12 = sbr.rel (0) target = $region5
    $region4: #{tpu_custom_call.1} parent=1 // pred_region
      %s14 = ssub.s32 128, 128
      %15 = vsyncadd [#allocation3], %s14
      %s17 = sshll.u32 [#allocation2], 4
      %s18 = int_to_ptr.vmem [resolvable:$true] %s17
      %20 = dma.hbm_to_vmem [thread:$0]  %s0, 128, %s18, [#allocation3]
    $region5: #{tpu_custom_call.1} parent=1 // pred_fallthru
      _
    // Predicated region
    $region6: #{tpu_custom_call.1} parent=1 // pred_check
      _
    $region7: #{tpu_custom_call.1} parent=1 // pred_check_branch
      %22 = sbr.rel (0) target = $region9
    $region8: #{tpu_custom_call.1} parent=1 // pred_region
      %s24 = ssub.s32 128, 128
      %25 = vsyncadd [#allocation6], %s24
      %s27 = sshll.u32 [#allocation5], 4
      %s28 = int_to_ptr.vmem [resolvable:$true] %s27
      %30 = dma.hbm_to_vmem [thread:$0]  %s1, 128, %s28, [#allocation6]
    $region9: #{tpu_custom_call.1} parent=1 // pred_fallthru
      _
    // Predicated region
    $region10: #{tpu_custom_call.1} parent=1 // pred_check
      _
    $region11: #{tpu_custom_call.1} parent=1 // pred_check_branch
      %32 = sbr.rel (0) target = $region13
    $region12: #{tpu_custom_call.1} parent=1 // pred_region
      %s34 = ssub.s32 128, 128
      %35 = vsyncadd [#allocation6], %s34
      %s37 = sshll.u32 [#allocation7], 4
      %s38 = int_to_ptr.vmem [resolvable:$true] %s37
      %40 = dma.hbm_to_vmem [thread:$0]  %s2, 128, %s38, [#allocation6]
    $region13: #{tpu_custom_call.1} parent=1 // pred_fallthru
      _
    // Predicated region
    $region14: #{tpu_custom_call.1} parent=1 // pred_check
      _
    $region15: #{tpu_custom_call.1} parent=1 // pred_check_branch
      %42 = sbr.rel (0) target = $region17
    $region16: #{tpu_custom_call.1} parent=1 // pred_region
      %43 = dma.done [#allocation3], 128
    $region17: #{tpu_custom_call.1} parent=1 // pred_fallthru
      _
    // Predicated region
    $region18: #{tpu_custom_call.1} parent=1 // pred_check
      _
    $region19: #{tpu_custom_call.1} parent=1 // pred_check_branch
      %45 = sbr.rel (0) target = $region21
    $region20: #{tpu_custom_call.1} parent=1 // pred_region
      %46 = dma.done [#allocation6], 128
    $region21: #{tpu_custom_call.1} parent=1 // pred_fallthru
      _
    // Predicated region
    $region22: #{tpu_custom_call.1} parent=1 // pred_check
      _
    $region23: #{tpu_custom_call.1} parent=1 // pred_check_branch
      %48 = sbr.rel (0) target = $region25
    $region24: #{tpu_custom_call.1} parent=1 // pred_region
      %49 = dma.done [#allocation6], 128
    $region25: #{tpu_custom_call.1} parent=1 // pred_fallthru
      _
    %v50 = vld [vmem:[#allocation2] sm:$0xff]
    %v51 = vld [vmem:[#allocation5] sm:$0xff]
    %v52 = vld [vmem:[#allocation7] sm:$0xff]
    %vm53 = vcmask 64512
    %v54 = vsel %vm53, %v50, -inf
    %55 = vmax.xlane.f32.xlu0 %v54
    %v56 = vpop.xlane.xlu0 %55
    %v57 = vsub.f32 %v50, %v56
    %v58 = vmul.f32 %v57, 1.442695
    %v59 = vpow.pop %v58
    %v60 = vsel %vm53, %v59, 0.0
    %61 = vadd.xlane.f32.xlu0 %v60
    %v62 = vpop.xlane.xlu0 %61
    %v63 = vlog2.pop %v62
    %v64 = vmul.f32 %v63, 0.6931472
    %v65 = vsub.f32 %v57, %v64
    %v66 = vmul.f32 %v65, %v51
    %68 = vset.pattern.permute.xlu0 0
    %69 = vperm.xlu0 %68, %v52
    %v70 = vpop.permute.xlu0 %69
    %v72 = vmul.f32 %v66, %v70
    %v73 = vsel %vm53, %v72, 0.0
    %74 = vadd.xlane.f32.xlu0 %v73
    %v75 = vpop.xlane.xlu0 %74
    %v76 = vrot.slane %v75, 4
    %v77 = vadd.f32 %v75, %v76
    %v78 = vrot.slane %v77, 2
    %v79 = vadd.f32 %v77, %v78
    %v80 = vrot.slane %v79, 1
    %v81 = vadd.f32 %v79, %v80
    %s82 = vtos %v81
    %s83 = ssub.f32 0.0, %s82
    %s84 = smul.f32 %s83, 0.125
    %v85 = vmul.f32 %v52, %v52
    %87 = vrot.lane.b32.xlu0 %v85, 127
    %v88 = vpop.permute.xlu0 %87
    %vm90 = vcmask 253952
    %v91 = vsel %vm90, %v88, 0.0
    %92 = vadd.xlane.f32.xlu0 %v91
    %v93 = vpop.xlane.xlu0 %92
    %v94 = vrot.slane %v93, 4
    %v95 = vadd.f32 %v93, %v94
    %v96 = vrot.slane %v95, 2
    %v97 = vadd.f32 %v95, %v96
    %v98 = vrot.slane %v97, 1
    %v99 = vadd.f32 %v97, %v98
    %s100 = vtos %v99
    %s101 = smul.f32 %s100, 0.01
    %s102 = sadd.f32 %s84, %s101
    %s103 = scalar_lea.smem [#allocation8], 0
    %104 = sst [smem:[%s103]] %s102
    // Predicated region
    $region26: #{tpu_custom_call.1} parent=1 // pred_check
      _
    $region27: #{tpu_custom_call.1} parent=1 // pred_check_branch
      %106 = sbr.rel (0) target = $region29
    $region28: #{tpu_custom_call.1} parent=1 // pred_region
      %s108 = ssub.s32 16, 16
      %109 = vsyncadd [#allocation4], %s108
      %112 = dma.smem_to_hbm [#allocation8], 16, %s3, [#allocation4]
    $region29: #{tpu_custom_call.1} parent=1 // pred_fallthru
      _
    // Predicated region
    $region30: #{tpu_custom_call.1} parent=1 // pred_check
      _
    $region31: #{tpu_custom_call.1} parent=1 // pred_check_branch
      %114 = sbr.rel (0) target = $region33
    $region32: #{tpu_custom_call.1} parent=1 // pred_region
      %115 = dma.done [#allocation4], 16
    $region33: #{tpu_custom_call.1} parent=1 // pred_fallthru
      _
    %116 = sfence
    %117 = vsyncpa [#allocation3], 1
    %118 = vsyncpa [#allocation6], 1
    %119 = vsyncpa [#allocation4], 1

</llo_original>
